<compile_context>
chip_gen: v7x
topology: tpu7x:2x2x1
jax: 0.10.0
libtpu: 0.0.40
codegen_flags: <defaults>
</compile_context>

<pallas_src>
import jax
import jax.numpy as jnp
from jax import lax
from jax.experimental import pallas as pl
from jax.experimental.pallas import tpu as pltpu


def _make_l1_kernel(*, block_rows, lanes, steps, total_blocks, valid_rows,
                    chunk, has_phantom):
    """Per-block sum|pred - targ| fold kernel, specialized on static sizes."""
    needs_mask = (valid_rows % block_rows) != 0   # ragged last row-block

    def kernel(pred_ref, targ_ref, acc_ref):
        c = pl.program_id(0)          # core split (size 2 only on v7x)
        i = pl.program_id(1)          # streaming / reduction axis

        @pl.when(i == 0)
        def _():
            acc_ref[...] = jnp.zeros_like(acc_ref)

        blk = c * steps + i           # unclamped row-block index into the slab

        def fold_chunk(r0, crows):
            # Widen to f32 BEFORE the subtract (bf16 accuracy); VPU-only work.
            p = pred_ref[pl.ds(r0, crows), :].astype(jnp.float32)
            t = targ_ref[pl.ds(r0, crows), :].astype(jnp.float32)
            d = jnp.abs(p - t)
            if needs_mask:
                row = blk * block_rows + r0 + lax.broadcasted_iota(
                    jnp.int32, (crows, lanes), 0)
                d = jnp.where(row < valid_rows, d, 0.0)
            r8 = (crows // 8) * 8
            if r8:
                # Fold rows down to 8 sublanes with elementwise (VPU) adds.
                acc_ref[...] += d[:r8].reshape(r8 // 8, 8, lanes).sum(axis=0)
            if crows - r8:
                # Leftover (< 8) rows of a tiny block.
                acc_ref[0:1, :] += d[r8:].sum(axis=0, keepdims=True)

        def fold_block():
            if block_rows > chunk and block_rows % chunk == 0:
                # Chunked fold: never materializes a full-block f32 temp.
                def body(g, carry):
                    fold_chunk(pl.multiple_of(g * chunk, chunk), chunk)
                    return carry
                lax.fori_loop(0, block_rows // chunk, body, 0, unroll=True)
            else:
                fold_chunk(0, block_rows)

        if has_phantom:
            # Odd block count split across 2 cores: the clamped phantom block
            # re-reads valid rows; skip its contribution entirely.
            pl.when(blk < total_blocks)(fold_block)
        else:
            fold_block()

    return kernel


def _device_kind():
    try:
        return (jax.devices()[0].device_kind or "").lower()
    except Exception:
        return ""


def l1_loss(pred, targ):
    """Computes {'loss': mean |pred - targ|, 'L1': same}, like the PyTorch module."""
    assert pred.shape == targ.shape, "pred/targ must have identical shapes"
    if pred.dtype != targ.dtype:
        dt = jnp.promote_types(pred.dtype, targ.dtype)
        pred, targ = pred.astype(dt), targ.astype(dt)
    n = int(pred.size)
    assert n > 0

    flat_p = pred.reshape(-1)
    flat_t = targ.reshape(-1)

    # ---- generation-aware knobs -------------------------------------------
    kind = _device_kind()
    is_v7 = "v7" in kind
    target_block_bytes = (8 if is_v7 else 4) * 1024 * 1024   # per input block
    max_splits = 2 if is_v7 else 1                           # TensorCores/chip
    vmem_limit = (48 if is_v7 else 64) * 1024 * 1024

    # ---- lane-dense slab without any full-array pad/copy -------------------
    if n % 512 == 0:
        lanes = 512
    elif n % 256 == 0:
        lanes = 256
    else:
        lanes = 128
    rem = n % lanes            # nonzero only when 128 does not divide n
    n_main = n - rem
    rows = n_main // lanes

    if rem:
        # Tiny suffix (< 128 elements): plain JAX reads only the suffix slice.
        tail_sum = jnp.sum(jnp.abs(flat_p[n_main:].astype(jnp.float32)
                                   - flat_t[n_main:].astype(jnp.float32)))
    else:
        tail_sum = jnp.float32(0.0)

    if rows == 0:              # degenerate: everything fit in the tail
        loss = (tail_sum / jnp.float32(n)).astype(jnp.float32)
        return {"loss": loss, "L1": loss}

    if rem:
        # TODO(synk): when 128 does not divide n, this prefix slice is the one
        # bounded copy we cannot avoid while keeping a lane-dense slab.
        slab_p = flat_p[:n_main].reshape(rows, lanes)
        slab_t = flat_t[:n_main].reshape(rows, lanes)
    else:
        slab_p = flat_p.reshape(rows, lanes)     # free reshape, no copy
        slab_t = flat_t.reshape(rows, lanes)

    # ---- constant-byte block sizing (dtype & generation aware) -------------
    itemsize = jnp.dtype(slab_p.dtype).itemsize
    chunk = 512                                   # in-kernel fold chunk (rows)
    desired_rows = max(chunk,
                       (target_block_bytes // (lanes * itemsize)) // chunk * chunk)
    block_rows = desired_rows if rows >= desired_rows else rows
    total_blocks = -(-rows // block_rows)

    splits = max_splits if (max_splits > 1 and total_blocks >= 4) else 1
    steps = -(-total_blocks // splits)
    has_phantom = splits * steps > total_blocks

    kernel = _make_l1_kernel(block_rows=block_rows, lanes=lanes, steps=steps,
                             total_blocks=total_blocks, valid_rows=rows,
                             chunk=chunk, has_phantom=has_phantom)

    def in_map(c, i):
        # Clamp so a phantom block (odd block count, 2-way split) stays in bounds.
        return (jnp.minimum(c * steps + i, total_blocks - 1), 0)

    partials = pl.pallas_call(
        kernel,
        out_shape=jax.ShapeDtypeStruct((splits * 8, lanes), jnp.float32),
        grid_spec=pltpu.PrefetchScalarGridSpec(
            num_scalar_prefetch=0,
            grid=(splits, steps),
            in_specs=[
                pl.BlockSpec((block_rows, lanes), in_map),
                pl.BlockSpec((block_rows, lanes), in_map),
            ],
            # One resident (8, lanes) partial-sum block per core split.
            out_specs=pl.BlockSpec((8, lanes), lambda c, i: (c, 0)),
        ),
        compiler_params=pltpu.CompilerParams(
            dimension_semantics=("parallel", "arbitrary"),
            vmem_limit_bytes=vmem_limit,
        ),
        cost_estimate=pl.CostEstimate(
            flops=3 * rows * lanes,
            transcendentals=0,
            bytes_accessed=2 * rows * lanes * itemsize + 4 * splits * 8 * lanes,
        ),
    )(slab_p, slab_t)

    # Final tiny cross-lane reduction + mean in plain JAX.
    loss = ((jnp.sum(partials) + tail_sum) / jnp.float32(n)).astype(jnp.float32)
    return {"loss": loss, "L1": loss}


if __name__ == "__main__":
    key = jax.random.PRNGKey(0)
    ks = jax.random.split(key, 8)

    # Primary small test, matching the module's [batch, horizon, states] layout.
    batch, horizon, states = 2, 8, 32
    pred = jax.random.normal(ks[0], (batch, horizon, states), dtype=jnp.float32)
    targ = jax.random.normal(ks[1], (batch, horizon, states), dtype=jnp.float32)
    out = l1_loss(pred, targ)
    jax.block_until_ready(out["loss"])
    ref = jnp.mean(jnp.abs(pred - targ))
    assert jnp.allclose(out["loss"], ref, rtol=1e-4, atol=1e-6), (out["loss"], ref)
    assert jnp.allclose(out["L1"], ref, rtol=1e-4, atol=1e-6)

    # Multi-block path: in-kernel-masked ragged last block + chunked fold.
    p2 = jax.random.normal(ks[2], (4, 600, 512), dtype=jnp.float32)
    t2 = jax.random.normal(ks[3], (4, 600, 512), dtype=jnp.float32)
    o2 = l1_loss(p2, t2)
    r2 = jnp.mean(jnp.abs(p2 - t2))
    assert jnp.allclose(o2["loss"], r2, rtol=1e-4, atol=1e-6), (o2["loss"], r2)

    # bf16 inputs (f32 widening happens before the subtract, inside the kernel).
    p3 = jax.random.normal(ks[4], (8, 256, 512), dtype=jnp.bfloat16)
    t3 = jax.random.normal(ks[5], (8, 256, 512), dtype=jnp.bfloat16)
    o3 = l1_loss(p3, t3)
    r3 = jnp.mean(jnp.abs(p3.astype(jnp.float32) - t3.astype(jnp.float32)))
    assert jnp.allclose(o3["loss"], r3, rtol=1e-3, atol=1e-5), (o3["loss"], r3)

    # Element count not a multiple of 128: plain-JAX suffix tail + tiny slab.
    p4 = jax.random.normal(ks[6], (3, 7, 13), dtype=jnp.float32)
    t4 = jax.random.normal(ks[7], (3, 7, 13), dtype=jnp.float32)
    o4 = l1_loss(p4, t4)
    r4 = jnp.mean(jnp.abs(p4 - t4))
    assert jnp.allclose(o4["loss"], r4, rtol=1e-4, atol=1e-6), (o4["loss"], r4)

    jax.block_until_ready(o4["loss"])
    print("KERNEL_OK")
</pallas_src>

<mosaic_0001>
module attributes {stable_mosaic.version = 11 : i64} {
  func.func @kernel(%arg0: i32, %arg1: i32, %arg2: memref<1x512xf32, #tpu.memory_space<vmem>>, %arg3: memref<1x512xf32, #tpu.memory_space<vmem>>, %arg4: memref<8x512xf32, #tpu.memory_space<vmem>>) attributes {dimension_semantics = [#tpu.dimension_semantics<parallel>, #tpu.dimension_semantics<arbitrary>], iteration_bounds = array<i64: 1, 1>, scalar_prefetch = 0 : i64, scratch_operands = 0 : i64, tpu.core_type = #tpu.core_type<tc>, window_params = [{transform_indices = @transform_0, window_bounds = array<i64: 1, 512>}, {transform_indices = @transform_1, window_bounds = array<i64: 1, 512>}, {transform_indices = @transform_2, window_bounds = array<i64: 8, 512>}]} {
    %c0_i32 = arith.constant 0 : i32
    %0 = arith.cmpi eq, %arg1, %c0_i32 : i32
    %1 = arith.extui %0 : i1 to i32
    %c0_i32_0 = arith.constant 0 : i32
    %2 = arith.cmpi ne, %1, %c0_i32_0 : i32
    scf.if %2 {
      %cst_8 = arith.constant 0.000000e+00 : f32
      %12 = vector.broadcast %cst_8 : f32 to vector<8x512xf32>
      %c0_9 = arith.constant 0 : index
      %c0_10 = arith.constant 0 : index
      %13 = vector.load %arg4[%c0_9, %c0_10] : memref<8x512xf32, #tpu.memory_space<vmem>>, vector<8x512xf32>
      tpu.vector_store %arg4[%c0_9, %c0_10], %12 {strides = array<i32>} : memref<8x512xf32, #tpu.memory_space<vmem>>, vector<8x512xf32>,
    } else {
    }
    %c0 = arith.constant 0 : index
    %c0_1 = arith.constant 0 : index
    %3 = vector.load %arg2[%c0, %c0_1] : memref<1x512xf32, #tpu.memory_space<vmem>>, vector<1x512xf32>
    %c0_2 = arith.constant 0 : index
    %c0_3 = arith.constant 0 : index
    %4 = vector.load %arg3[%c0_2, %c0_3] : memref<1x512xf32, #tpu.memory_space<vmem>>, vector<1x512xf32>
    %5 = arith.subf %3, %4 : vector<1x512xf32>
    %6 = math.absf %5 : vector<1x512xf32>
    %c0_4 = arith.constant 0 : index
    %c0_5 = arith.constant 0 : index
    %7 = vector.load %arg4[%c0_4, %c0_5] : memref<8x512xf32, #tpu.memory_space<vmem>>, vector<1x512xf32>
    %cst = arith.constant dense<0.000000e+00> : vector<512xf32>
    %8 = vector.multi_reduction <add>, %6, %cst [0] : vector<1x512xf32> to vector<512xf32>
    %9 = vector.shape_cast %8 : vector<512xf32> to vector<1x512xf32>
    %10 = arith.addf %7, %9 : vector<1x512xf32>
    %c0_6 = arith.constant 0 : index
    %c0_7 = arith.constant 0 : index
    %11 = vector.load %arg4[%c0_6, %c0_7] : memref<8x512xf32, #tpu.memory_space<vmem>>, vector<1x512xf32>
    tpu.vector_store %arg4[%c0_6, %c0_7], %10 {strides = array<i32>} : memref<8x512xf32, #tpu.memory_space<vmem>>, vector<1x512xf32>,
    return
  }
  func.func @transform_0(%arg0: i32, %arg1: i32) -> (i32, i32) {
    %c1_i32 = arith.constant 1 : i32
    %0 = arith.muli %arg0, %c1_i32 : i32
    %1 = arith.addi %0, %arg1 : i32
    %c0_i32 = arith.constant 0 : i32
    %2 = arith.minsi %1, %c0_i32 : i32
    %c0_i32_0 = arith.constant 0 : i32
    %c0_i32_1 = arith.constant 0 : i32
    return %2, %c0_i32_0 : i32, i32
  }
  func.func @transform_1(%arg0: i32, %arg1: i32) -> (i32, i32) {
    %c1_i32 = arith.constant 1 : i32
    %0 = arith.muli %arg0, %c1_i32 : i32
    %1 = arith.addi %0, %arg1 : i32
    %c0_i32 = arith.constant 0 : i32
    %2 = arith.minsi %1, %c0_i32 : i32
    %c0_i32_0 = arith.constant 0 : i32
    %c0_i32_1 = arith.constant 0 : i32
    return %2, %c0_i32_0 : i32, i32
  }
  func.func @transform_2(%arg0: i32, %arg1: i32) -> (i32, i32) {
    %c0_i32 = arith.constant 0 : i32
    %c0_i32_0 = arith.constant 0 : i32
    return %arg0, %c0_i32 : i32, i32
  }
}

</mosaic_0001>

<llo_original>
// kernel: tpu_custom_call.1
$region0: #{tpu_custom_call.1}
  #allocation0 [shape = 'u32[]', space=smem, size = 0x4, offset = 0x4, fixed_abs, tag = 'smem constant byte address 0x4 - core index']
  #allocation1 [shape = 'u32[144,128]{1,0:T(1,128)}', space=vmem, size = 0x12000, scoped, tag = 'internal scratch']
  %s0 = inlined_call_operand.hbm [shape: f32[1,512], index: 0, kind: input, shape index: {}]
  %s1 = inlined_call_operand.hbm [shape: f32[1,512], index: 1, kind: input, shape index: {}]
  %s2 = inlined_call_operand.hbm [shape: f32[8,512], index: 2, kind: output, shape index: {}]
  %s3 = sld [smem:[#allocation0]]
  $region30: #{tpu_custom_call.1} parent=0
    _
  %s5 = ssub.s32 1, %s3
  %s6 = scalar_select 0, %s5, %s3
  $region1: #{tpu_custom_call.1} parent=0
    #allocation2 [shape = 'u8[2048]{0}', space=vmem, size = 0x800, scoped, tag = 'input window, operand 0, single buffered']
    #allocation3 [shape = 's32[1]{0}', space=sflag, size = 0x4, scoped, tag = 'scoped memory for tpu_custom_call.1']
    #allocation4 [shape = 's32[1]{0}', space=sflag, size = 0x4, scoped, tag = 'scoped memory for tpu_custom_call.1']
    #allocation5 [shape = 'u8[2048]{0}', space=vmem, size = 0x800, scoped, tag = 'input window, operand 1, single buffered']
    #allocation6 [shape = 's32[1]{0}', space=sflag, size = 0x4, scoped, tag = 'scoped memory for tpu_custom_call.1']
    #allocation7 [shape = 'u8[16384]{0}', space=vmem, size = 0x4000, scoped, tag = 'output window, operand 0, single buffered']
    %7 = vsyncpa [#allocation3], 0
    %8 = vsyncpa [#allocation6], 0
    %9 = vsyncpa [#allocation4], 0
    // Predicated region
    $region2: #{tpu_custom_call.1} parent=1 // pred_check
      _
    $region3: #{tpu_custom_call.1} parent=1 // pred_check_branch
      %11 = sbr.rel (0) target = $region5
    $region4: #{tpu_custom_call.1} parent=1 // pred_region
      %s12 = sadd.s32 0, 0
      %p13 = scmp.lt.s32.totalorder %s12, 0
      %s14 = scalar_select %p13, %s12, 0
      %s16 = ssub.s32 64, 64
      %17 = vsyncadd [#allocation3], %s16
      %s18 = smul.addr %s14, 4
      %s19 = smul.addr %s18, 16
      %s20 = scalar_lea.hbm %s0, %s19
      %s22 = sshll.u32 [#allocation2], 4
      %s23 = int_to_ptr.vmem [resolvable:$true] %s22
      %25 = dma.hbm_to_vmem [thread:$0]  %s20, 64, %s23, [#allocation3]
    $region5: #{tpu_custom_call.1} parent=1 // pred_fallthru
      _
    // Predicated region
    $region6: #{tpu_custom_call.1} parent=1 // pred_check
      _
    $region7: #{tpu_custom_call.1} parent=1 // pred_check_branch
      %27 = sbr.rel (0) target = $region9
    $region8: #{tpu_custom_call.1} parent=1 // pred_region
      %s28 = sadd.s32 0, 0
      %p29 = scmp.lt.s32.totalorder %s28, 0
      %s30 = scalar_select %p29, %s28, 0
      %s32 = ssub.s32 64, 64
      %33 = vsyncadd [#allocation6], %s32
      %s34 = smul.addr %s30, 4
      %s35 = smul.addr %s34, 16
      %s36 = scalar_lea.hbm %s1, %s35
      %s38 = sshll.u32 [#allocation5], 4
      %s39 = int_to_ptr.vmem [resolvable:$true] %s38
      %41 = dma.hbm_to_vmem [thread:$0]  %s36, 64, %s39, [#allocation6]
    $region9: #{tpu_custom_call.1} parent=1 // pred_fallthru
      _
    // Predicated region
    $region10: #{tpu_custom_call.1} parent=1 // pred_check
      _
    $region11: #{tpu_custom_call.1} parent=1 // pred_check_branch
      %43 = sbr.rel (0) target = $region13
    $region12: #{tpu_custom_call.1} parent=1 // pred_region
      %44 = dma.done [#allocation3], 64
    $region13: #{tpu_custom_call.1} parent=1 // pred_fallthru
      _
    // Predicated region
    $region14: #{tpu_custom_call.1} parent=1 // pred_check
      _
    $region15: #{tpu_custom_call.1} parent=1 // pred_check_branch
      %46 = sbr.rel (0) target = $region17
    $region16: #{tpu_custom_call.1} parent=1 // pred_region
      %47 = dma.done [#allocation6], 64
    $region17: #{tpu_custom_call.1} parent=1 // pred_fallthru
      _
    %s48 = sadd.s32 0, 0
    %p49 = scmp.lt.s32.totalorder %s48, 0
    %s50 = scalar_select %p49, %s48, 0
    %s51 = sadd.s32 0, 0
    %p52 = scmp.lt.s32.totalorder %s51, 0
    %s53 = scalar_select %p52, %s51, 0
    %p54 = scmp.eq.s32.totalorder 0, 0
    // Predicated region
    $region18: #{tpu_custom_call.1} parent=1 // pred_check
      %p55 = pneg %p54
    $region19: #{tpu_custom_call.1} parent=1 // pred_check_branch
      %57 = sbr.rel (%p55) target = $region21
    $region20: #{tpu_custom_call.1} parent=1 // pred_region
      %58 = vst [vmem:[#allocation7] sm:$0xff] 0.0
      %59 = vst [vmem:[#allocation7 + $0x8] sm:$0xff] 0.0
      %60 = vst [vmem:[#allocation7 + $0x10] sm:$0xff] 0.0
      %61 = vst [vmem:[#allocation7 + $0x18] sm:$0xff] 0.0
    $region21: #{tpu_custom_call.1} parent=1 // pred_fallthru
      _
    %v62 = vld [vmem:[#allocation2] sm:$0xf]
    %v63 = vld [vmem:[#allocation5] sm:$0xf]
    %v64 = vsub.f32 %v62, %v63
    %v65 = vand.u32 2147483647, %v64
    %v66 = vld [vmem:[#allocation7] ss:$8 sm:$0xf]
    %v67 = vadd.f32 %v65, 0.0
    %v68 = vadd.f32 %v66, %v67
    %v69 = vlaneseq
    %vm70 = vcmp.ge.s32.totalorder %v69, 0
    %vm71 = vcmp.lt.s32.totalorder %v69, 512
    %vm72 = vmand %vm70, %vm71
    %73 = vst.msk [vmem:[#allocation7] ss:$8 sm:$0xf] %vm72, %v68
    %74 = vst.msk [vmem:[#allocation7] ss:$8 sm:$0x0] %vm72, %v68
    // Predicated region
    $region22: #{tpu_custom_call.1} parent=1 // pred_check
      _
    $region23: #{tpu_custom_call.1} parent=1 // pred_check_branch
      %76 = sbr.rel (0) target = $region25
    $region24: #{tpu_custom_call.1} parent=1 // pred_region
      %s78 = ssub.s32 512, 512
      %79 = vsyncadd [#allocation4], %s78
      %s81 = sshll.u32 [#allocation7], 4
      %s82 = int_to_ptr.vmem [resolvable:$true] %s81
      %84 = dma.vmem_to_hbm [thread:$0]  %s82, 512, %s2, [#allocation4]
    $region25: #{tpu_custom_call.1} parent=1 // pred_fallthru
      _
    // Predicated region
    $region26: #{tpu_custom_call.1} parent=1 // pred_check
      _
    $region27: #{tpu_custom_call.1} parent=1 // pred_check_branch
      %86 = sbr.rel (0) target = $region29
    $region28: #{tpu_custom_call.1} parent=1 // pred_region
      %87 = dma.done [#allocation4], 512
    $region29: #{tpu_custom_call.1} parent=1 // pred_fallthru
      _
    %88 = vsyncpa [#allocation3], 1
    %89 = vsyncpa [#allocation6], 1
    %90 = vsyncpa [#allocation4], 1

</llo_original>
